<compile_context>
chip_gen: v5e
topology: v5e:2x2
jax: 0.10.0
libtpu: 0.0.40
codegen_flags: <defaults>
</compile_context>

<pallas_src>
import jax
import jax.numpy as jnp
from jax.experimental import pallas as pl
from jax.experimental.pallas import tpu as pltpu

POOL = 32  # kernel_size / stride along D


def _cdiv(a, b):
    return (a + b - 1) // b


def _round_up(a, b):
    return _cdiv(a, b) * b


def _vmem_capacity_bytes():
    try:
        return int(pltpu.get_tpu_info().vmem_capacity_bytes)
    except Exception:
        return 64 * 1024 * 1024  # conservative default (v7x per-TensorCore)


def _select_tiles(rows, S, itemsize, sub_q, extra_steps=1):
    """Pick (BR, BS) row/lane block sizes.

    Targets ~16 MiB input slabs (amortizes the ~0.35us per-step cost), caps the
    double-buffered footprint against the queried VMEM capacity, keeps BS
    lane-dense (multiple of 128 or full S), BR a multiple of the dtype sublane
    quantum, and ensures enough grid steps for pipelining + megacore sharding.
    """
    vmem_cap = _vmem_capacity_bytes()
    # footprint ~= 2 * in_block * (1 + 1/POOL); keep it under ~65% of VMEM.
    per_block_cap = int(0.65 * vmem_cap / (2.0 * (1.0 + 1.0 / POOL)))
    per_block = min(16 * 1024 * 1024, per_block_cap)

    # Lane tile: prefer the full lane extent (one fully contiguous slab per
    # fused row); tile in multiples of 128 only when full-S can't fit.
    if POOL * S * itemsize * sub_q <= per_block:
        BS = S
    else:
        BS = max(128, (per_block // (sub_q * POOL * itemsize)) // 128 * 128)

    # Row tile: as many fused rows as fit the byte target.
    BR = max(sub_q, (per_block // (POOL * BS * itemsize)) // sub_q * sub_q)
    BR = min(BR, _round_up(rows, sub_q))

    # Ensure >= ~8 grid steps (>= 4 per TensorCore on v7x) when possible, so
    # the DMA pipeline has a steady state and both cores get work.
    other_steps = _cdiv(S, BS) * extra_steps
    if other_steps * _cdiv(rows, BR) < 8:
        row_blocks_needed = _cdiv(8, other_steps)
        BR = max(sub_q, _round_up(_cdiv(rows, row_blocks_needed), sub_q))
        BR = min(BR, _round_up(rows, sub_q))
    return BR, BS


def _vmem_limit_bytes(BR, BS, itemsize):
    # Double-buffered input + output blocks, plus 25% headroom for compiler
    # scratch, capped inside the physical (generation-dependent) capacity.
    footprint = 2 * (BR * POOL * BS + BR * BS) * itemsize
    return min(int(0.9 * _vmem_capacity_bytes()),
               max(32 * 1024 * 1024, int(1.25 * footprint)))


def _maxpool_kernel(x_ref, o_ref):
    # x_ref: (BR, POOL, BS) block — POOL on sublanes, BS on lanes.
    # o_ref: (BR, BS) lane-dense output block.
    # Sublane max-reduce: a handful of VPU/XLU ops per output vreg, fully
    # hidden under the 32:1 HBM read traffic of this memory-bound kernel.
    o_ref[...] = jnp.max(x_ref[...], axis=1)


def direct_max_pool(x):
    """MaxPool3d(kernel=[32,1,1], stride=[32,1,1]) on NCDHW input.

    x: (N, C, D, H, W) with D >= 32.  Returns (N, C, D//32, H, W).
    """
    N, C, D, H, W = x.shape
    d_out = D // POOL
    if d_out < 1:
        raise ValueError(f"depth D={D} must be >= pooling window {POOL}")

    S = H * W
    itemsize = jnp.dtype(x.dtype).itemsize
    sub_q = max(8, 32 // itemsize)  # dtype-aware sublane quantum (f32:8 bf16:16 i8:32)

    if D == d_out * POOL:
        # Fast path: (N,C,D,H,W) -> (R, POOL, S) is a free contiguous reshape.
        R = N * C * d_out
        xr = x.reshape(R, POOL, S)
        BR, BS = _select_tiles(R, S, itemsize, sub_q)
        grid = (_cdiv(R, BR), _cdiv(S, BS))
        out = pl.pallas_call(
            _maxpool_kernel,
            out_shape=jax.ShapeDtypeStruct((R, S), x.dtype),
            grid=grid,
            in_specs=[pl.BlockSpec((BR, POOL, BS), lambda i, j: (i, 0, j))],
            out_specs=pl.BlockSpec((BR, BS), lambda i, j: (i, j)),
            compiler_params=pltpu.CompilerParams(
                dimension_semantics=("parallel", "parallel"),
                vmem_limit_bytes=_vmem_limit_bytes(BR, BS, itemsize),
            ),
            cost_estimate=pl.CostEstimate(
                flops=(POOL - 1) * R * S,
                transcendentals=0,
                bytes_accessed=(R * POOL * S + R * S) * itemsize,
            ),
        )(xr)
        return out.reshape(N, C, d_out, H, W)

    # Tail path (D % 32 != 0): keep the input un-sliced (the slice would cost a
    # full extra HBM read+write of x) and skip the partial tail window with a
    # 3-D grid over (row-blocks, d_out, lane-blocks).  Only the 32x-smaller
    # output is transposed afterwards (~6% extra traffic vs ~2x for the slice).
    NC = N * C
    xr = x.reshape(NC, D, S)
    BR, BS = _select_tiles(NC, S, itemsize, sub_q, extra_steps=d_out)
    grid = (_cdiv(NC, BR), d_out, _cdiv(S, BS))
    out = pl.pallas_call(
        _maxpool_kernel,
        out_shape=jax.ShapeDtypeStruct((d_out, NC, S), x.dtype),
        grid=grid,
        in_specs=[pl.BlockSpec((BR, POOL, BS), lambda i, d, j: (i, d, j))],
        out_specs=pl.BlockSpec((None, BR, BS), lambda i, d, j: (d, i, j)),
        compiler_params=pltpu.CompilerParams(
            dimension_semantics=("parallel", "parallel", "parallel"),
            vmem_limit_bytes=_vmem_limit_bytes(BR, BS, itemsize),
        ),
        cost_estimate=pl.CostEstimate(
            flops=(POOL - 1) * NC * d_out * S,
            transcendentals=0,
            bytes_accessed=(NC * d_out * POOL * S + NC * d_out * S) * itemsize,
        ),
    )(xr)
    return jnp.transpose(out, (1, 0, 2)).reshape(N, C, d_out, H, W)


if __name__ == "__main__":
    k1, k2 = jax.random.split(jax.random.PRNGKey(0))

    # Main case: D divisible by 32 (fast 2-D path).
    N, C, D, H, W = 2, 4, 64, 8, 16
    x = jax.random.normal(k1, (N, C, D, H, W), dtype=jnp.float32)
    y = jax.block_until_ready(direct_max_pool(x))
    ref = jnp.max(x.reshape(N, C, D // POOL, POOL, H, W), axis=3)
    assert y.shape == (N, C, D // POOL, H, W), y.shape
    assert jnp.allclose(y, ref), "mismatch vs reference (divisible-D path)"

    # Tail case: D % 32 != 0 (no-copy 3-D-grid path; PyTorch drops the tail window).
    D2 = 40
    x2 = jax.random.normal(k2, (N, C, D2, H, W), dtype=jnp.float32)
    y2 = jax.block_until_ready(direct_max_pool(x2))
    d_out2 = D2 // POOL
    ref2 = jnp.max(x2[:, :, : d_out2 * POOL].reshape(N, C, d_out2, POOL, H, W), axis=3)
    assert y2.shape == (N, C, d_out2, H, W), y2.shape
    assert jnp.allclose(y2, ref2), "mismatch vs reference (tail-D path)"

    print("KERNEL_OK")
</pallas_src>

<mosaic_0001>
module attributes {stable_mosaic.version = 11 : i64} {
  func.func @_maxpool_kernel(%arg0: i32, %arg1: i32, %arg2: memref<8x32x128xf32, #tpu.memory_space<vmem>>, %arg3: memref<8x128xf32, #tpu.memory_space<vmem>>) attributes {dimension_semantics = [#tpu.dimension_semantics<parallel>, #tpu.dimension_semantics<parallel>], iteration_bounds = array<i64: 2, 1>, scalar_prefetch = 0 : i64, scratch_operands = 0 : i64, tpu.core_type = #tpu.core_type<tc>, window_params = [{transform_indices = @transform_0, window_bounds = array<i64: 8, 32, 128>}, {transform_indices = @transform_1, window_bounds = array<i64: 8, 128>}]} {
    %c0 = arith.constant 0 : index
    %c0_0 = arith.constant 0 : index
    %c0_1 = arith.constant 0 : index
    %0 = vector.load %arg2[%c0, %c0_0, %c0_1] : memref<8x32x128xf32, #tpu.memory_space<vmem>>, vector<8x32x128xf32>
    %cst = arith.constant dense<0xFF800000> : vector<8x128xf32>
    %1 = vector.multi_reduction <maximumf>, %0, %cst [1] : vector<8x32x128xf32> to vector<8x128xf32>
    %c0_2 = arith.constant 0 : index
    %c0_3 = arith.constant 0 : index
    %2 = vector.load %arg3[%c0_2, %c0_3] : memref<8x128xf32, #tpu.memory_space<vmem>>, vector<8x128xf32>
    tpu.vector_store %arg3[%c0_2, %c0_3], %1 {strides = array<i32>} : memref<8x128xf32, #tpu.memory_space<vmem>>, vector<8x128xf32>,
    return
  }
  func.func @transform_0(%arg0: i32, %arg1: i32) -> (i32, i32, i32) {
    %c0_i32 = arith.constant 0 : i32
    %c0_i32_0 = arith.constant 0 : i32
    return %arg0, %c0_i32, %arg1 : i32, i32, i32
  }
  func.func @transform_1(%arg0: i32, %arg1: i32) -> (i32, i32) {
    %c0_i32 = arith.constant 0 : i32
    return %arg0, %arg1 : i32, i32
  }
}

</mosaic_0001>

<llo_original>
// kernel: tpu_custom_call.1
$region0: #{tpu_custom_call.1}
  #allocation0 [shape = 'u32[]', space=smem, size = 0x4, offset = 0x4, fixed_abs, tag = 'smem constant byte address 0x4 - core index']
  #allocation1 [shape = 'u32[72,128]{1,0:T(1,128)}', space=vmem, size = 0x9000, scoped, tag = 'internal scratch']
  %s0 = inlined_call_operand.hbm [shape: f32[16,32,128], index: 0, kind: input, shape index: {}]
  %s1 = inlined_call_operand.hbm [shape: f32[16,128], index: 1, kind: output, shape index: {}]
  %s2 = sld [smem:[#allocation0]]
  $region41: #{tpu_custom_call.1} parent=0
    _
  %s4 = ssub.s32 1, %s2
  %s5 = scalar_select 0, %s4, %s2
  $region1: #{tpu_custom_call.1} parent=0
    #allocation2 [shape = 'u8[262144]{0}', space=vmem, size = 0x40000, scoped, tag = 'input window, operand 0']
    #allocation3 [shape = 's32[2]{0}', space=sflag, size = 0x8, scoped, tag = 'scoped memory for tpu_custom_call.1']
    #allocation4 [shape = 's32[2]{0}', space=sflag, size = 0x8, scoped, tag = 'scoped memory for tpu_custom_call.1']
    #allocation5 [shape = 'u8[8192]{0}', space=vmem, size = 0x2000, scoped, tag = 'output window, operand 0']
    %6 = vsyncpa [#allocation3], 0
    %s7 = scalar_lea.sflag [#allocation3], 1
    %8 = vsyncpa %s7, 0
    %9 = vsyncpa [#allocation4], 0
    %s10 = scalar_lea.sflag [#allocation4], 1
    %11 = vsyncpa %s10, 0
    loop: start=0, step=1, limit=4
    $region2: #{tpu_custom_call.1} parent=1 // loop_pre_header
      _
    $region3: #{tpu_custom_call.1} parent=1 // loop_header
      %s13 = sphi 0, %s17
      %p14 = scmp.ge.s32.totalorder %s13, 4
      %s20 = sphi 0, %s32
      %s21 = sphi 0, %s28
      %s22 = sphi 0, %s20
      %s23 = sphi 0, %s21
      %s24 = sphi 0, %s22
      %s25 = sphi 0, %s23
      %s37 = sphi 0, %s39
      %s40 = sphi 0, %s37
      %s41 = sphi 0, %s40
      %s57 = sphi 0, %s41
      %s65 = sphi 0, %s67
      %s68 = sphi 0, %s65
      %s69 = sphi 0, %s68
      %s85 = sphi 0, %s69
    $region4: #{tpu_custom_call.1} parent=1 // loop_header_branch
      %16 = sbr.rel (%p14) target = $region8
    $region5: #{tpu_custom_call.1} parent=1 // loop_body
      %s18 = ssub.s32 %s13, 1
      %s19 = ssub.s32 %s13, 2
      %s26 = sadd.s32 1, %s21
      %p27 = scmp.ge.s32.totalorder %s26, 1
      %s28 = scalar_select %p27, 0, %s26
      %s29 = sadd.s32 1, %s20
      %s30 = scalar_select %p27, %s29, %s20
      %p31 = scmp.ge.s32.totalorder %s30, 2
      %s32 = scalar_select %p31, 0, %s30
      %s33 = ssub.s32 %s20, %s32
      %s34 = ssub.s32 %s21, %s28
      %s35 = sor.u32 %s33, %s34
      %p36 = scmp.eq.s32.totalorder %s35, 0
      %s38 = sadd.s32 %s37, 1
      %s39 = scalar_select %p36, %s37, %s38
      %p42 = pneg %p36
      %p43 = scmp.eq.s32.totalorder %s13, 1
      %p44 = por %p42, %p43
      %p45 = scmp.ne.s32.totalorder %s37, %s40
      %p46 = scmp.eq.s32.totalorder %s13, 0
      %p47 = por %p45, %p46
      %p48 = scmp.ne.s32.totalorder %s37, %s40
      %p49 = scmp.eq.s32.totalorder %s18, 1
      %p50 = por %p48, %p49
      %p51 = scmp.ne.s32.totalorder %s40, %s41
      %p52 = scmp.eq.s32.totalorder %s18, 0
      %p53 = por %p51, %p52
      %p54 = scmp.ne.s32.totalorder %s40, %s41
      %p55 = scmp.eq.s32.totalorder %s19, 1
      %p56 = por %p54, %p55
      %p58 = scmp.ne.s32.totalorder %s41, %s57
      %p59 = scmp.eq.s32.totalorder %s19, 0
      %p60 = por %p58, %p59
      %s61 = ssub.s32 %s20, %s32
      %s62 = ssub.s32 %s21, %s28
      %s63 = sor.u32 %s61, %s62
      %p64 = scmp.eq.s32.totalorder %s63, 0
      %s66 = sadd.s32 %s65, 1
      %s67 = scalar_select %p64, %s65, %s66
      %p70 = pneg %p64
      %p71 = scmp.eq.s32.totalorder %s13, 1
      %p72 = por %p70, %p71
      %p73 = scmp.ne.s32.totalorder %s65, %s68
      %p74 = scmp.eq.s32.totalorder %s13, 0
      %p75 = por %p73, %p74
      %p76 = scmp.ne.s32.totalorder %s65, %s68
      %p77 = scmp.eq.s32.totalorder %s18, 1
      %p78 = por %p76, %p77
      %p79 = scmp.ne.s32.totalorder %s68, %s69
      %p80 = scmp.eq.s32.totalorder %s18, 0
      %p81 = por %p79, %p80
      %p82 = scmp.ne.s32.totalorder %s68, %s69
      %p83 = scmp.eq.s32.totalorder %s19, 1
      %p84 = por %p82, %p83
      %p86 = scmp.ne.s32.totalorder %s69, %s85
      %p87 = scmp.eq.s32.totalorder %s19, 0
      %p88 = por %p86, %p87
      %p89 = scmp.le.s32.totalorder 1, %s13
      %p90 = scmp.lt.s32.totalorder %s13, 3
      %p91 = pnand %p89, %p90
      %p92 = pneg %p91
      // Predicated region
      $region9: #{tpu_custom_call.1} parent=5 // pred_check
        _
      $region10: #{tpu_custom_call.1} parent=5 // pred_check_branch
        %94 = sbr.rel (%p91) target = $region12
      $region11: #{tpu_custom_call.1} parent=5 // pred_region
        %s95 = ssub.s32 %s13, 1
      $region12: #{tpu_custom_call.1} parent=5 // pred_fallthru
        _
      %p96 = scmp.lt.s32.totalorder %s13, 2
      // Predicated region
      $region13: #{tpu_custom_call.1} parent=5 // pred_check
        %p97 = pneg %p96
      $region14: #{tpu_custom_call.1} parent=5 // pred_check_branch
        %99 = sbr.rel (%p97) target = $region16
      $region15: #{tpu_custom_call.1} parent=5 // pred_region
        // Predicated region
        $region17: #{tpu_custom_call.1} parent=15 // pred_check
          %p100 = pneg %p47
        $region18: #{tpu_custom_call.1} parent=15 // pred_check_branch
          %102 = sbr.rel (%p100) target = $region20
        $region19: #{tpu_custom_call.1} parent=15 // pred_region
          %s103 = sand.u32 %s37, 1
          %s104 = scalar_lea.sflag [#allocation3], %s103
          %s105 = sand.u32 %s37, 1
          %s106 = smul.addr %s105, 256
          %s107 = scalar_lea.vmem [#allocation2], %s106
          %s108 = smul.u32 8, %s20
          %110 = vsyncadd %s104, 0
          %s111 = smul.addr %s108, 4
          %s112 = sadd.s32 %s21, %s111
          %s113 = smul.addr %s112, 8
          %s114 = scalar_lea.hbm %s0, %s113
          %s115 = sshll.u32 %s114, 4
          %s116 = int_to_ptr.hbm [resolvable:$true] %s115
          %s117 = sshll.u32 %s107, 4
          %s118 = int_to_ptr.vmem [resolvable:$true] %s117
          %123 = dma.hbm_to_vmem [thread:$0]  %s116, 4096, %s118, %s104, 128, 128, 8
        $region20: #{tpu_custom_call.1} parent=15 // pred_fallthru
          _
      $region16: #{tpu_custom_call.1} parent=5 // pred_fallthru
        _
      %p124 = scmp.le.s32.totalorder 1, %s13
      %p125 = scmp.lt.s32.totalorder %s13, 3
      %p126 = pnand %p124, %p125
      %p127 = pneg %p126
      // Predicated region
      $region21: #{tpu_custom_call.1} parent=5 // pred_check
        _
      $region22: #{tpu_custom_call.1} parent=5 // pred_check_branch
        %129 = sbr.rel (%p126) target = $region24
      $region23: #{tpu_custom_call.1} parent=5 // pred_region
        %s130 = ssub.s32 %s13, 1
        %s131 = sand.u32 %s40, 1
        %s132 = scalar_lea.sflag [#allocation3], %s131
        %s133 = sand.u32 %s40, 1
        %s134 = smul.addr %s133, 256
        %s135 = scalar_lea.vmem [#allocation2], %s134
        // Predicated region
        $region25: #{tpu_custom_call.1} parent=23 // pred_check
          %p136 = pneg %p53
        $region26: #{tpu_custom_call.1} parent=23 // pred_check_branch
          %138 = sbr.rel (%p136) target = $region28
        $region27: #{tpu_custom_call.1} parent=23 // pred_region
          %140 = dma.done %s132, 4096
        $region28: #{tpu_custom_call.1} parent=23 // pred_fallthru
          _
        %s141 = sand.u32 %s40, 1
        %s142 = scalar_lea.sflag [#allocation3], %s141
        %s143 = sand.u32 %s40, 1
        %s144 = smul.addr %s143, 256
        %s145 = scalar_lea.vmem [#allocation2], %s144
        %p146 = pneg %p53
        %p147 = pneg %p50
        %p148 = pneg %p81
        %p149 = pneg %p78
        %s150 = sand.u32 %s68, 1
        %s151 = scalar_lea.sflag [#allocation4], %s150
        %s152 = sand.u32 %s68, 1
        %s153 = smul.addr %s152, 8
        %s154 = scalar_lea.vmem [#allocation5], %s153
        %s155 = smul.u32 8, %s22
        %v156 = vld [vmem:[%s135] sm:$0xff]
        %v157 = vld [vmem:[%s135 + $0x8] sm:$0xff]
        %v158 = vld [vmem:[%s135 + $0x10] sm:$0xff]
        %v159 = vld [vmem:[%s135 + $0x18] sm:$0xff]
        %v160 = vld [vmem:[%s135 + $0x20] sm:$0xff]
        %v161 = vld [vmem:[%s135 + $0x28] sm:$0xff]
        %v162 = vld [vmem:[%s135 + $0x30] sm:$0xff]
        %v163 = vld [vmem:[%s135 + $0x38] sm:$0xff]
        %v164 = vld [vmem:[%s135 + $0x40] sm:$0xff]
        %v165 = vld [vmem:[%s135 + $0x48] sm:$0xff]
        %v166 = vld [vmem:[%s135 + $0x50] sm:$0xff]
        %v167 = vld [vmem:[%s135 + $0x58] sm:$0xff]
        %v168 = vld [vmem:[%s135 + $0x60] sm:$0xff]
        %v169 = vld [vmem:[%s135 + $0x68] sm:$0xff]
        %v170 = vld [vmem:[%s135 + $0x70] sm:$0xff]
        %v171 = vld [vmem:[%s135 + $0x78] sm:$0xff]
        %v172 = vld [vmem:[%s135 + $0x80] sm:$0xff]
        %v173 = vld [vmem:[%s135 + $0x88] sm:$0xff]
        %v174 = vld [vmem:[%s135 + $0x90] sm:$0xff]
        %v175 = vld [vmem:[%s135 + $0x98] sm:$0xff]
        %v176 = vld [vmem:[%s135 + $0xa0] sm:$0xff]
        %v177 = vld [vmem:[%s135 + $0xa8] sm:$0xff]
        %v178 = vld [vmem:[%s135 + $0xb0] sm:$0xff]
        %v179 = vld [vmem:[%s135 + $0xb8] sm:$0xff]
        %v180 = vld [vmem:[%s135 + $0xc0] sm:$0xff]
        %v181 = vld [vmem:[%s135 + $0xc8] sm:$0xff]
        %v182 = vld [vmem:[%s135 + $0xd0] sm:$0xff]
        %v183 = vld [vmem:[%s135 + $0xd8] sm:$0xff]
        %v184 = vld [vmem:[%s135 + $0xe0] sm:$0xff]
        %v185 = vld [vmem:[%s135 + $0xe8] sm:$0xff]
        %v186 = vld [vmem:[%s135 + $0xf0] sm:$0xff]
        %v187 = vld [vmem:[%s135 + $0xf8] sm:$0xff]
        %v188 = vmax.f32 %v156, %v157
        %v189 = vmax.f32 %v188, %v158
        %v190 = vmax.f32 %v189, %v159
        %v191 = vrot.slane %v190, 4
        %v192 = vmax.f32 %v190, %v191
        %v193 = vrot.slane %v192, 2
        %v194 = vmax.f32 %v192, %v193
        %v195 = vrot.slane %v194, 1
        %v196 = vmax.f32 %v194, %v195
        %v197 = vmax.f32 %v160, %v161
        %v198 = vmax.f32 %v197, %v162
        %v199 = vmax.f32 %v198, %v163
        %v200 = vrot.slane %v199, 4
        %v201 = vmax.f32 %v199, %v200
        %v202 = vrot.slane %v201, 2
        %v203 = vmax.f32 %v201, %v202
        %v204 = vrot.slane %v203, 1
        %v205 = vmax.f32 %v203, %v204
        %v206 = vmax.f32 %v164, %v165
        %v207 = vmax.f32 %v206, %v166
        %v208 = vmax.f32 %v207, %v167
        %v209 = vrot.slane %v208, 4
        %v210 = vmax.f32 %v208, %v209
        %v211 = vrot.slane %v210, 2
        %v212 = vmax.f32 %v210, %v211
        %v213 = vrot.slane %v212, 1
        %v214 = vmax.f32 %v212, %v213
        %v215 = vmax.f32 %v168, %v169
        %v216 = vmax.f32 %v215, %v170
        %v217 = vmax.f32 %v216, %v171
        %v218 = vrot.slane %v217, 4
        %v219 = vmax.f32 %v217, %v218
        %v220 = vrot.slane %v219, 2
        %v221 = vmax.f32 %v219, %v220
        %v222 = vrot.slane %v221, 1
        %v223 = vmax.f32 %v221, %v222
        %v224 = vmax.f32 %v172, %v173
        %v225 = vmax.f32 %v224, %v174
        %v226 = vmax.f32 %v225, %v175
        %v227 = vrot.slane %v226, 4
        %v228 = vmax.f32 %v226, %v227
        %v229 = vrot.slane %v228, 2
        %v230 = vmax.f32 %v228, %v229
        %v231 = vrot.slane %v230, 1
        %v232 = vmax.f32 %v230, %v231
        %v233 = vmax.f32 %v176, %v177
        %v234 = vmax.f32 %v233, %v178
        %v235 = vmax.f32 %v234, %v179
        %v236 = vrot.slane %v235, 4
        %v237 = vmax.f32 %v235, %v236
        %v238 = vrot.slane %v237, 2
        %v239 = vmax.f32 %v237, %v238
        %v240 = vrot.slane %v239, 1
        %v241 = vmax.f32 %v239, %v240
        %v242 = vmax.f32 %v180, %v181
        %v243 = vmax.f32 %v242, %v182
        %v244 = vmax.f32 %v243, %v183
        %v245 = vrot.slane %v244, 4
        %v246 = vmax.f32 %v244, %v245
        %v247 = vrot.slane %v246, 2
        %v248 = vmax.f32 %v246, %v247
        %v249 = vrot.slane %v248, 1
        %v250 = vmax.f32 %v248, %v249
        %v251 = vmax.f32 %v184, %v185
        %v252 = vmax.f32 %v251, %v186
        %v253 = vmax.f32 %v252, %v187
        %v254 = vrot.slane %v253, 4
        %v255 = vmax.f32 %v253, %v254
        %v256 = vrot.slane %v255, 2
        %v257 = vmax.f32 %v255, %v256
        %v258 = vrot.slane %v257, 1
        %v259 = vmax.f32 %v257, %v258
        %vm268 = vcmask 1041409
        %v269 = vsel %vm268, %v205, %v196
        %vm270 = vcmask 1042434
        %v271 = vsel %vm270, %v214, %v269
        %vm272 = vcmask 1043459
        %v273 = vsel %vm272, %v223, %v271
        %vm274 = vcmask 1044484
        %v275 = vsel %vm274, %v232, %v273
        %vm276 = vcmask 1045509
        %v277 = vsel %vm276, %v241, %v275
        %vm278 = vcmask 1046534
        %v279 = vsel %vm278, %v250, %v277
        %vm280 = vcmask 1047559
        %v281 = vsel %vm280, %v259, %v279
        %283 = vst [vmem:[%s154] sm:$0xff] %v281
        %s284 = sand.u32 %s68, 1
        %s285 = scalar_lea.sflag [#allocation4], %s284
        %s286 = sand.u32 %s68, 1
        %s287 = smul.addr %s286, 8
        %s288 = scalar_lea.vmem [#allocation5], %s287
        // Predicated region
        $region29: #{tpu_custom_call.1} parent=23 // pred_check
          %p289 = pneg %p78
        $region30: #{tpu_custom_call.1} parent=23 // pred_check_branch
          %291 = sbr.rel (%p289) target = $region32
        $region31: #{tpu_custom_call.1} parent=23 // pred_region
          %293 = vsyncadd %s285, 0
          %s294 = sadd.s32 %s23, %s22
          %s295 = smul.addr %s294, 8
          %s296 = scalar_lea.hbm %s1, %s295
          %s298 = sshll.u32 %s288, 4
          %s299 = int_to_ptr.vmem [resolvable:$true] %s298
          %s300 = sshll.u32 %s296, 4
          %s301 = int_to_ptr.hbm [resolvable:$true] %s300
          %303 = dma.vmem_to_hbm [thread:$0]  %s299, 128, %s301, %s285
        $region32: #{tpu_custom_call.1} parent=23 // pred_fallthru
          _
      $region24: #{tpu_custom_call.1} parent=5 // pred_fallthru
        _
      %p304 = scmp.le.s32.totalorder 2, %s13
      // Predicated region
      $region33: #{tpu_custom_call.1} parent=5 // pred_check
        %p305 = pneg %p304
      $region34: #{tpu_custom_call.1} parent=5 // pred_check_branch
        %307 = sbr.rel (%p305) target = $region36
      $region35: #{tpu_custom_call.1} parent=5 // pred_region
        %s308 = ssub.s32 %s13, 2
        // Predicated region
        $region37: #{tpu_custom_call.1} parent=35 // pred_check
          %p309 = pneg %p84
        $region38: #{tpu_custom_call.1} parent=35 // pred_check_branch
          %311 = sbr.rel (%p309) target = $region40
        $region39: #{tpu_custom_call.1} parent=35 // pred_region
          %s312 = sand.u32 %s69, 1
          %s313 = scalar_lea.sflag [#allocation4], %s312
          %s314 = sand.u32 %s69, 1
          %s315 = smul.addr %s314, 8
          %s316 = scalar_lea.vmem [#allocation5], %s315
          %318 = dma.done %s313, 128
        $region40: #{tpu_custom_call.1} parent=35 // pred_fallthru
          _
      $region36: #{tpu_custom_call.1} parent=5 // pred_fallthru
        _
    $region6: #{tpu_custom_call.1} parent=1 // loop_footer
      %s17 = sadd.s32 1, %s13
    $region7: #{tpu_custom_call.1} parent=1 // loop_footer_branch
      %12 = sbr.rel target = $region3
    $region8: #{tpu_custom_call.1} parent=1 // loop_exit
      _
    %319 = vsyncpa [#allocation3], 1
    %s320 = scalar_lea.sflag [#allocation3], 1
    %321 = vsyncpa %s320, 1
    %322 = vsyncpa [#allocation4], 1
    %s323 = scalar_lea.sflag [#allocation4], 1
    %324 = vsyncpa %s323, 1

</llo_original>
